<compile_context>
chip_gen: v7x
topology: tpu7x:2x2x1
jax: 0.10.0
libtpu: 0.0.40
codegen_flags: <defaults>
</compile_context>

<pallas_src>
import math

import jax
import jax.numpy as jnp
from jax.experimental import pallas as pl
from jax.experimental.pallas import tpu as pltpu


def _make_bce_dice_kernel(rows, tile, d2, acc_w, needs_mask):
    """Builds the reduction kernel.

    rows       : packed batch rows (N * R)
    tile       : lanes per grid step
    d2         : valid feature length per packed row
    acc_w      : accumulator lane width (128, or tile when tile is a single
                 non-128-multiple block)
    needs_mask : whether the last grid step reads a partial block
    """
    n_chunks = tile // acc_w

    def kernel(x_ref, y_ref, inter_ref, s_ref, t_ref, inter_acc, s_acc, t_acc):
        k = pl.program_id(0)

        @pl.when(k == 0)
        def _():
            inter_acc[...] = jnp.zeros_like(inter_acc)
            s_acc[...] = jnp.zeros_like(s_acc)
            t_acc[...] = jnp.zeros_like(t_acc)

        x = x_ref[...].astype(jnp.float32)
        y = y_ref[...].astype(jnp.float32)

        if needs_mask:
            # Mask lanes past the true feature length (only the last, partial
            # block has any; for earlier blocks the predicate is all-true).
            col = k * tile + jax.lax.broadcasted_iota(jnp.int32, (rows, tile), 1)
            valid = col < d2
            x = jnp.where(valid, x, -jnp.inf)   # sigmoid(-inf) == 0 exactly
            y = jnp.where(valid, y, 0.0)

        s = jax.nn.sigmoid(x)                   # torch.sigmoid(input)
        sy = s * y                              # input * target

        # VPU-only lane-block fold: (rows, tile) -> (rows, acc_w) without any
        # per-step cross-lane (XLU) reduction.  Slices are 128-lane aligned
        # whenever n_chunks > 1.
        def lane_fold(v):
            out = v[:, 0:acc_w]
            for j in range(1, n_chunks):
                out = out + v[:, j * acc_w:(j + 1) * acc_w]
            return out

        inter_acc[...] += lane_fold(sy)
        s_acc[...] += lane_fold(s)
        t_acc[...] += lane_fold(y)

        @pl.when(k == pl.num_programs(0) - 1)
        def _():
            # Single cross-lane reduce per accumulator, once per kernel.
            inter_ref[...] = jnp.sum(inter_acc[...], axis=1, keepdims=True)
            s_ref[...] = jnp.sum(s_acc[...], axis=1, keepdims=True)
            t_ref[...] = jnp.sum(t_acc[...], axis=1, keepdims=True)

    return kernel


def bce_dice_loss(logits, target, *, tile=4096):
    """Pallas implementation of BCEDiceLoss11.forward.

    logits, target: same shape, first dim is batch N. Returns scalar float32.
    """
    smooth = 1e-05
    n = logits.shape[0]
    x2d = jnp.reshape(logits, (n, -1))
    y2d = jnp.reshape(target, (n, -1))
    if not jnp.issubdtype(y2d.dtype, jnp.floating):
        y2d = y2d.astype(jnp.float32)
    d = x2d.shape[1]

    # --- Sublane packing: (N, D) -> (N*R, D/R) with N*R a multiple of 8 ----
    m = 8 // math.gcd(n, 8)
    r = m if (m > 1 and d % m == 0) else 1
    rows = n * r
    d2 = d // r
    if r > 1:
        x2d = x2d.reshape(rows, d2)
        y2d = y2d.reshape(rows, d2)

    # --- VMEM-aware tile selection ------------------------------------------
    rows_pad = -(-rows // 8) * 8
    x_item = jnp.dtype(x2d.dtype).itemsize
    y_item = jnp.dtype(y2d.dtype).itemsize
    pipe_budget = 16 * 1024 * 1024  # bytes for double-buffered input tiles
    cap = pipe_budget // (2 * rows_pad * (x_item + y_item))
    cap = max(128, (cap // 128) * 128)
    tile = max(128, min(int(tile), cap))
    tile = (tile // 128) * 128

    if d2 <= tile:
        # Tiny problem: one grid step, whole (packed) row as the block.
        tile = d2
        n_steps = 1
        needs_mask = False
    else:
        n_steps = (d2 + tile - 1) // tile
        needs_mask = (d2 % tile) != 0

    acc_w = 128 if (tile >= 128 and tile % 128 == 0) else tile

    kernel = _make_bce_dice_kernel(rows, tile, d2, acc_w, needs_mask)
    out_sds = jax.ShapeDtypeStruct((rows, 1), jnp.float32)

    inter, ssum, tsum = pl.pallas_call(
        kernel,
        out_shape=(out_sds, out_sds, out_sds),
        grid_spec=pltpu.PrefetchScalarGridSpec(
            num_scalar_prefetch=0,
            grid=(n_steps,),
            in_specs=[
                pl.BlockSpec((rows, tile), lambda k: (0, k)),
                pl.BlockSpec((rows, tile), lambda k: (0, k)),
            ],
            out_specs=[
                pl.BlockSpec((rows, 1), lambda k: (0, 0)),
                pl.BlockSpec((rows, 1), lambda k: (0, 0)),
                pl.BlockSpec((rows, 1), lambda k: (0, 0)),
            ],
            scratch_shapes=[
                pltpu.VMEM((rows, acc_w), jnp.float32),
                pltpu.VMEM((rows, acc_w), jnp.float32),
                pltpu.VMEM((rows, acc_w), jnp.float32),
            ],
        ),
        compiler_params=pltpu.CompilerParams(
            dimension_semantics=("arbitrary",),
            vmem_limit_bytes=32 * 1024 * 1024,
        ),
    )(x2d, y2d)

    # --- Unpack rows and finish the (tiny) dice math in plain JAX ------------
    inter = inter.reshape(n, r).sum(axis=1)
    ssum = ssum.reshape(n, r).sum(axis=1)
    tsum = tsum.reshape(n, r).sum(axis=1)
    dice = (2.0 * inter + smooth) / (ssum + tsum + smooth)
    return 1.0 - jnp.sum(dice) / n


def _reference(logits, target):
    """Pure-JAX reference mirroring the PyTorch forward."""
    smooth = 1e-05
    n = logits.shape[0]
    s = jax.nn.sigmoid(logits).reshape(n, -1)
    t = target.reshape(n, -1)
    inter = (s * t).sum(axis=1)
    dice = (2.0 * inter + smooth) / (s.sum(axis=1) + t.sum(axis=1) + smooth)
    return 1.0 - dice.sum() / n


if __name__ == "__main__":
    key = jax.random.PRNGKey(0)
    k1, k2 = jax.random.split(key)

    # Small shapes consistent with a segmentation head: NCHW = (2, 4, 16, 16)
    N, C, H, W = 2, 4, 16, 16
    logits = jax.random.normal(k1, (N, C, H, W), dtype=jnp.float32)
    target = (jax.random.uniform(k2, (N, C, H, W)) > 0.5).astype(jnp.float32)

    loss = bce_dice_loss(logits, target)
    loss = jax.block_until_ready(loss)

    ref = _reference(logits, target)
    assert jnp.allclose(loss, ref, atol=1e-5, rtol=1e-5), (loss, ref)

    # Also exercise the multi-step masked-tail path with a non-divisible,
    # larger feature dim to make sure the general tiling is correct.
    N2, C2, H2, W2 = 2, 3, 37, 41     # D = 4551, not a multiple of 128
    lg2 = jax.random.normal(jax.random.PRNGKey(1), (N2, C2, H2, W2), jnp.float32)
    tg2 = (jax.random.uniform(jax.random.PRNGKey(2), (N2, C2, H2, W2)) > 0.5
           ).astype(jnp.float32)
    loss2 = jax.block_until_ready(bce_dice_loss(lg2, tg2, tile=512))
    ref2 = _reference(lg2, tg2)
    assert jnp.allclose(loss2, ref2, atol=1e-5, rtol=1e-5), (loss2, ref2)

    print("KERNEL_OK")
</pallas_src>

<mosaic_0001>
module attributes {stable_mosaic.version = 11 : i64} {
  func.func @kernel(%arg0: i32, %arg1: memref<8x256xf32, #tpu.memory_space<vmem>>, %arg2: memref<8x256xf32, #tpu.memory_space<vmem>>, %arg3: memref<8x1xf32, #tpu.memory_space<vmem>>, %arg4: memref<8x1xf32, #tpu.memory_space<vmem>>, %arg5: memref<8x1xf32, #tpu.memory_space<vmem>>, %arg6: memref<8x128xf32, #tpu.memory_space<vmem>>, %arg7: memref<8x128xf32, #tpu.memory_space<vmem>>, %arg8: memref<8x128xf32, #tpu.memory_space<vmem>>) attributes {dimension_semantics = [#tpu.dimension_semantics<arbitrary>], iteration_bounds = array<i64: 1>, scalar_prefetch = 0 : i64, scratch_operands = 3 : i64, tpu.core_type = #tpu.core_type<tc>, window_params = [{transform_indices = @transform_0, window_bounds = array<i64: 8, 256>}, {transform_indices = @transform_1, window_bounds = array<i64: 8, 256>}, {pipeline_mode = #tpu.pipeline_mode<synchronous>, transform_indices = @transform_2, window_bounds = array<i64: 8, 1>}, {pipeline_mode = #tpu.pipeline_mode<synchronous>, transform_indices = @transform_3, window_bounds = array<i64: 8, 1>}, {pipeline_mode = #tpu.pipeline_mode<synchronous>, transform_indices = @transform_4, window_bounds = array<i64: 8, 1>}]} {
    %c0_i32 = arith.constant 0 : i32
    %0 = arith.cmpi eq, %arg0, %c0_i32 : i32
    %1 = arith.extui %0 : i1 to i32
    %c0_i32_0 = arith.constant 0 : i32
    %2 = arith.cmpi ne, %1, %c0_i32_0 : i32
    scf.if %2 {
      %cst_18 = arith.constant 0.000000e+00 : f32
      %32 = vector.broadcast %cst_18 : f32 to vector<8x128xf32>
      %c0_19 = arith.constant 0 : index
      %c0_20 = arith.constant 0 : index
      %33 = vector.load %arg6[%c0_19, %c0_20] : memref<8x128xf32, #tpu.memory_space<vmem>>, vector<8x128xf32>
      tpu.vector_store %arg6[%c0_19, %c0_20], %32 {strides = array<i32>} : memref<8x128xf32, #tpu.memory_space<vmem>>, vector<8x128xf32>,
      %cst_21 = arith.constant 0.000000e+00 : f32
      %34 = vector.broadcast %cst_21 : f32 to vector<8x128xf32>
      %c0_22 = arith.constant 0 : index
      %c0_23 = arith.constant 0 : index
      %35 = vector.load %arg7[%c0_22, %c0_23] : memref<8x128xf32, #tpu.memory_space<vmem>>, vector<8x128xf32>
      tpu.vector_store %arg7[%c0_22, %c0_23], %34 {strides = array<i32>} : memref<8x128xf32, #tpu.memory_space<vmem>>, vector<8x128xf32>,
      %cst_24 = arith.constant 0.000000e+00 : f32
      %36 = vector.broadcast %cst_24 : f32 to vector<8x128xf32>
      %c0_25 = arith.constant 0 : index
      %c0_26 = arith.constant 0 : index
      %37 = vector.load %arg8[%c0_25, %c0_26] : memref<8x128xf32, #tpu.memory_space<vmem>>, vector<8x128xf32>
      tpu.vector_store %arg8[%c0_25, %c0_26], %36 {strides = array<i32>} : memref<8x128xf32, #tpu.memory_space<vmem>>, vector<8x128xf32>,
    } else {
    }
    %c0 = arith.constant 0 : index
    %c0_1 = arith.constant 0 : index
    %3 = vector.load %arg1[%c0, %c0_1] : memref<8x256xf32, #tpu.memory_space<vmem>>, vector<8x256xf32>
    %c0_2 = arith.constant 0 : index
    %c0_3 = arith.constant 0 : index
    %4 = vector.load %arg2[%c0_2, %c0_3] : memref<8x256xf32, #tpu.memory_space<vmem>>, vector<8x256xf32>
    %5 = arith.negf %3 : vector<8x256xf32>
    %6 = math.exp %5 : vector<8x256xf32>
    %cst = arith.constant 1.000000e+00 : f32
    %7 = vector.broadcast %cst : f32 to vector<8x256xf32>
    %8 = arith.addf %7, %6 : vector<8x256xf32>
    %9 = arith.divf %7, %8 : vector<8x256xf32>
    %10 = arith.mulf %9, %4 : vector<8x256xf32>
    %c0_4 = arith.constant 0 : index
    %c0_5 = arith.constant 0 : index
    %11 = vector.load %arg6[%c0_4, %c0_5] : memref<8x128xf32, #tpu.memory_space<vmem>>, vector<8x128xf32>
    %12 = vector.extract_strided_slice %10 {offsets = [0, 0], sizes = [8, 128], strides = [1, 1]} : vector<8x256xf32> to vector<8x128xf32>
    %13 = vector.extract_strided_slice %10 {offsets = [0, 128], sizes = [8, 128], strides = [1, 1]} : vector<8x256xf32> to vector<8x128xf32>
    %14 = arith.addf %12, %13 : vector<8x128xf32>
    %15 = arith.addf %11, %14 : vector<8x128xf32>
    %c0_6 = arith.constant 0 : index
    %c0_7 = arith.constant 0 : index
    %16 = vector.load %arg6[%c0_6, %c0_7] : memref<8x128xf32, #tpu.memory_space<vmem>>, vector<8x128xf32>
    tpu.vector_store %arg6[%c0_6, %c0_7], %15 {strides = array<i32>} : memref<8x128xf32, #tpu.memory_space<vmem>>, vector<8x128xf32>,
    %c0_8 = arith.constant 0 : index
    %c0_9 = arith.constant 0 : index
    %17 = vector.load %arg7[%c0_8, %c0_9] : memref<8x128xf32, #tpu.memory_space<vmem>>, vector<8x128xf32>
    %18 = vector.extract_strided_slice %9 {offsets = [0, 0], sizes = [8, 128], strides = [1, 1]} : vector<8x256xf32> to vector<8x128xf32>
    %19 = vector.extract_strided_slice %9 {offsets = [0, 128], sizes = [8, 128], strides = [1, 1]} : vector<8x256xf32> to vector<8x128xf32>
    %20 = arith.addf %18, %19 : vector<8x128xf32>
    %21 = arith.addf %17, %20 : vector<8x128xf32>
    %c0_10 = arith.constant 0 : index
    %c0_11 = arith.constant 0 : index
    %22 = vector.load %arg7[%c0_10, %c0_11] : memref<8x128xf32, #tpu.memory_space<vmem>>, vector<8x128xf32>
    tpu.vector_store %arg7[%c0_10, %c0_11], %21 {strides = array<i32>} : memref<8x128xf32, #tpu.memory_space<vmem>>, vector<8x128xf32>,
    %c0_12 = arith.constant 0 : index
    %c0_13 = arith.constant 0 : index
    %23 = vector.load %arg8[%c0_12, %c0_13] : memref<8x128xf32, #tpu.memory_space<vmem>>, vector<8x128xf32>
    %24 = vector.extract_strided_slice %4 {offsets = [0, 0], sizes = [8, 128], strides = [1, 1]} : vector<8x256xf32> to vector<8x128xf32>
    %25 = vector.extract_strided_slice %4 {offsets = [0, 128], sizes = [8, 128], strides = [1, 1]} : vector<8x256xf32> to vector<8x128xf32>
    %26 = arith.addf %24, %25 : vector<8x128xf32>
    %27 = arith.addf %23, %26 : vector<8x128xf32>
    %c0_14 = arith.constant 0 : index
    %c0_15 = arith.constant 0 : index
    %28 = vector.load %arg8[%c0_14, %c0_15] : memref<8x128xf32, #tpu.memory_space<vmem>>, vector<8x128xf32>
    tpu.vector_store %arg8[%c0_14, %c0_15], %27 {strides = array<i32>} : memref<8x128xf32, #tpu.memory_space<vmem>>, vector<8x128xf32>,
    %c0_i32_16 = arith.constant 0 : i32
    %29 = arith.cmpi eq, %arg0, %c0_i32_16 : i32
    %30 = arith.extui %29 : i1 to i32
    %c0_i32_17 = arith.constant 0 : i32
    %31 = arith.cmpi ne, %30, %c0_i32_17 : i32
    scf.if %31 {
      %c0_18 = arith.constant 0 : index
      %c0_19 = arith.constant 0 : index
      %32 = vector.load %arg6[%c0_18, %c0_19] : memref<8x128xf32, #tpu.memory_space<vmem>>, vector<8x128xf32>
      %cst_20 = arith.constant dense<0.000000e+00> : vector<8xf32>
      %33 = vector.multi_reduction <add>, %32, %cst_20 [1] : vector<8x128xf32> to vector<8xf32>
      %34 = vector.shape_cast %33 : vector<8xf32> to vector<8x1xf32>
      %c0_21 = arith.constant 0 : index
      %c0_22 = arith.constant 0 : index
      %35 = vector.load %arg3[%c0_21, %c0_22] : memref<8x1xf32, #tpu.memory_space<vmem>>, vector<8x1xf32>
      tpu.vector_store %arg3[%c0_21, %c0_22], %34 {strides = array<i32>} : memref<8x1xf32, #tpu.memory_space<vmem>>, vector<8x1xf32>,
      %c0_23 = arith.constant 0 : index
      %c0_24 = arith.constant 0 : index
      %36 = vector.load %arg7[%c0_23, %c0_24] : memref<8x128xf32, #tpu.memory_space<vmem>>, vector<8x128xf32>
      %cst_25 = arith.constant dense<0.000000e+00> : vector<8xf32>
      %37 = vector.multi_reduction <add>, %36, %cst_25 [1] : vector<8x128xf32> to vector<8xf32>
      %38 = vector.shape_cast %37 : vector<8xf32> to vector<8x1xf32>
      %c0_26 = arith.constant 0 : index
      %c0_27 = arith.constant 0 : index
      %39 = vector.load %arg4[%c0_26, %c0_27] : memref<8x1xf32, #tpu.memory_space<vmem>>, vector<8x1xf32>
      tpu.vector_store %arg4[%c0_26, %c0_27], %38 {strides = array<i32>} : memref<8x1xf32, #tpu.memory_space<vmem>>, vector<8x1xf32>,
      %c0_28 = arith.constant 0 : index
      %c0_29 = arith.constant 0 : index
      %40 = vector.load %arg8[%c0_28, %c0_29] : memref<8x128xf32, #tpu.memory_space<vmem>>, vector<8x128xf32>
      %cst_30 = arith.constant dense<0.000000e+00> : vector<8xf32>
      %41 = vector.multi_reduction <add>, %40, %cst_30 [1] : vector<8x128xf32> to vector<8xf32>
      %42 = vector.shape_cast %41 : vector<8xf32> to vector<8x1xf32>
      %c0_31 = arith.constant 0 : index
      %c0_32 = arith.constant 0 : index
      %43 = vector.load %arg5[%c0_31, %c0_32] : memref<8x1xf32, #tpu.memory_space<vmem>>, vector<8x1xf32>
      tpu.vector_store %arg5[%c0_31, %c0_32], %42 {strides = array<i32>} : memref<8x1xf32, #tpu.memory_space<vmem>>, vector<8x1xf32>,
    } else {
    }
    return
  }
  func.func @transform_0(%arg0: i32) -> (i32, i32) {
    %c0_i32 = arith.constant 0 : i32
    %c0_i32_0 = arith.constant 0 : i32
    return %c0_i32, %arg0 : i32, i32
  }
  func.func @transform_1(%arg0: i32) -> (i32, i32) {
    %c0_i32 = arith.constant 0 : i32
    %c0_i32_0 = arith.constant 0 : i32
    return %c0_i32, %arg0 : i32, i32
  }
  func.func @transform_2(%arg0: i32) -> (i32, i32) {
    %c0_i32 = arith.constant 0 : i32
    %c0_i32_0 = arith.constant 0 : i32
    %c0_i32_1 = arith.constant 0 : i32
    return %c0_i32, %c0_i32_0 : i32, i32
  }
  func.func @transform_3(%arg0: i32) -> (i32, i32) {
    %c0_i32 = arith.constant 0 : i32
    %c0_i32_0 = arith.constant 0 : i32
    %c0_i32_1 = arith.constant 0 : i32
    return %c0_i32, %c0_i32_0 : i32, i32
  }
  func.func @transform_4(%arg0: i32) -> (i32, i32) {
    %c0_i32 = arith.constant 0 : i32
    %c0_i32_0 = arith.constant 0 : i32
    %c0_i32_1 = arith.constant 0 : i32
    return %c0_i32, %c0_i32_0 : i32, i32
  }
}

</mosaic_0001>

<llo_original>
// kernel: tpu_custom_call.1
$region0: #{tpu_custom_call.1}
  #allocation0 [shape = 'u32[]', space=smem, size = 0x4, offset = 0x4, fixed_abs, tag = 'smem constant byte address 0x4 - core index']
  #allocation1 [shape = 'u32[144,128]{1,0:T(1,128)}', space=vmem, size = 0x12000, scoped, tag = 'internal scratch']
  #allocation2 [shape = 'f32[8,128]{1,0:T(8,128)}', space=vmem, size = 0x1000, scoped, tag = 'scratch operand']
  #allocation3 [shape = 'f32[8,128]{1,0:T(8,128)}', space=vmem, size = 0x1000, scoped, tag = 'scratch operand']
  #allocation4 [shape = 'f32[8,128]{1,0:T(8,128)}', space=vmem, size = 0x1000, scoped, tag = 'scratch operand']
  %s0 = inlined_call_operand.hbm [shape: f32[8,256], index: 0, kind: input, shape index: {}]
  %s1 = inlined_call_operand.hbm [shape: f32[8,256], index: 1, kind: input, shape index: {}]
  %s2 = inlined_call_operand.vmem [shape: f32[8,1], index: 2, kind: output, shape index: {0}]
  %s3 = inlined_call_operand.vmem [shape: f32[8,1], index: 3, kind: output, shape index: {1}]
  %s4 = inlined_call_operand.vmem [shape: f32[8,1], index: 4, kind: output, shape index: {2}]
  %5 = xla_tuple %s2, %s3, %s4
  %s6 = sld [smem:[#allocation0]]
  $region50: #{tpu_custom_call.1} parent=0
    _
  %s8 = ssub.s32 1, %s6
  %s9 = scalar_select 0, %s8, %s6
  $region1: #{tpu_custom_call.1} parent=0
    #allocation5 [shape = 'u8[8192]{0}', space=vmem, size = 0x2000, scoped, tag = 'input window, operand 0, single buffered']
    #allocation6 [shape = 's32[1]{0}', space=sflag, size = 0x4, scoped, tag = 'scoped memory for tpu_custom_call.1']
    #allocation7 [shape = 'u8[8192]{0}', space=vmem, size = 0x2000, scoped, tag = 'input window, operand 1, single buffered']
    #allocation8 [shape = 's32[1]{0}', space=sflag, size = 0x4, scoped, tag = 'scoped memory for tpu_custom_call.1']
    %10 = vsyncpa [#allocation6], 0
    %11 = vsyncpa [#allocation8], 0
    // Predicated region
    $region2: #{tpu_custom_call.1} parent=1 // pred_check
      _
    $region3: #{tpu_custom_call.1} parent=1 // pred_check_branch
      %13 = sbr.rel (0) target = $region5
    $region4: #{tpu_custom_call.1} parent=1 // pred_region
      %s15 = ssub.s32 256, 256
      %16 = vsyncadd [#allocation6], %s15
      %s18 = sshll.u32 [#allocation5], 4
      %s19 = int_to_ptr.vmem [resolvable:$true] %s18
      %21 = dma.hbm_to_vmem [thread:$0]  %s0, 256, %s19, [#allocation6]
    $region5: #{tpu_custom_call.1} parent=1 // pred_fallthru
      _
    // Predicated region
    $region6: #{tpu_custom_call.1} parent=1 // pred_check
      _
    $region7: #{tpu_custom_call.1} parent=1 // pred_check_branch
      %23 = sbr.rel (0) target = $region9
    $region8: #{tpu_custom_call.1} parent=1 // pred_region
      %s25 = ssub.s32 256, 256
      %26 = vsyncadd [#allocation8], %s25
      %s28 = sshll.u32 [#allocation7], 4
      %s29 = int_to_ptr.vmem [resolvable:$true] %s28
      %31 = dma.hbm_to_vmem [thread:$0]  %s1, 256, %s29, [#allocation8]
    $region9: #{tpu_custom_call.1} parent=1 // pred_fallthru
      _
    // Predicated region
    $region10: #{tpu_custom_call.1} parent=1 // pred_check
      _
    $region11: #{tpu_custom_call.1} parent=1 // pred_check_branch
      %33 = sbr.rel (0) target = $region13
    $region12: #{tpu_custom_call.1} parent=1 // pred_region
      %34 = dma.done [#allocation6], 256
    $region13: #{tpu_custom_call.1} parent=1 // pred_fallthru
      _
    // Predicated region
    $region14: #{tpu_custom_call.1} parent=1 // pred_check
      _
    $region15: #{tpu_custom_call.1} parent=1 // pred_check_branch
      %36 = sbr.rel (0) target = $region17
    $region16: #{tpu_custom_call.1} parent=1 // pred_region
      %37 = dma.done [#allocation8], 256
    $region17: #{tpu_custom_call.1} parent=1 // pred_fallthru
      _
    %p38 = scmp.eq.s32.totalorder 0, 0
    // Predicated region
    $region18: #{tpu_custom_call.1} parent=1 // pred_check
      %p39 = pneg %p38
    $region19: #{tpu_custom_call.1} parent=1 // pred_check_branch
      %41 = sbr.rel (%p39) target = $region21
    $region20: #{tpu_custom_call.1} parent=1 // pred_region
      %42 = vst [vmem:[#allocation2] sm:$0xff] 0.0
      %43 = vst [vmem:[#allocation3] sm:$0xff] 0.0
      %44 = vst [vmem:[#allocation4] sm:$0xff] 0.0
    $region21: #{tpu_custom_call.1} parent=1 // pred_fallthru
      _
    %v45 = vld [vmem:[#allocation5] sm:$0xff]
    %v46 = vld [vmem:[#allocation5 + $0x8] sm:$0xff]
    %v47 = vld [vmem:[#allocation7] sm:$0xff]
    %v48 = vld [vmem:[#allocation7 + $0x8] sm:$0xff]
    %v49 = vxor.u32 %v45, 2147483648
    %v50 = vxor.u32 %v46, 2147483648
    %v51 = vmul.f32 %v49, 1.442695
    %v52 = vpow.pop %v51
    %v53 = vmul.f32 %v50, 1.442695
    %v54 = vpow.pop %v53
    %v55 = vadd.f32 %v52, 1.0
    %v56 = vadd.f32 %v54, 1.0
    %v57 = vrcp.pop %v55
    %v58 = vmul.f32 1.0, %v57
    %v59 = vrcp.pop %v56
    %v60 = vmul.f32 1.0, %v59
    %v61 = vmul.f32 %v58, %v47
    %v62 = vmul.f32 %v60, %v48
    %v63 = vld [vmem:[#allocation2] sm:$0xff]
    %v64 = vadd.f32 %v61, %v62
    %v65 = vadd.f32 %v63, %v64
    %66 = vst [vmem:[#allocation2] sm:$0xff] %v65
    %v67 = vld [vmem:[#allocation3] sm:$0xff]
    %v68 = vadd.f32 %v58, %v60
    %v69 = vadd.f32 %v67, %v68
    %70 = vst [vmem:[#allocation3] sm:$0xff] %v69
    %v71 = vld [vmem:[#allocation4] sm:$0xff]
    %v72 = vadd.f32 %v47, %v48
    %v73 = vadd.f32 %v71, %v72
    %74 = vst [vmem:[#allocation4] sm:$0xff] %v73
    // Predicated region
    $region22: #{tpu_custom_call.1} parent=1 // pred_check
      %p75 = pneg %p38
    $region23: #{tpu_custom_call.1} parent=1 // pred_check_branch
      %77 = sbr.rel (%p75) target = $region25
    $region24: #{tpu_custom_call.1} parent=1 // pred_region
      %v78 = vld [vmem:[#allocation2] sm:$0xff]
      %79 = vadd.xlane.f32.xlu0 %v78
      %v80 = vpop.xlane.xlu0 %79
      %vm81 = vcmask 7168
      %82 = vst.msk [vmem:[%s2] sm:$0xff] %vm81, %v80
      %v83 = vld [vmem:[#allocation3] sm:$0xff]
      %84 = vadd.xlane.f32.xlu0 %v83
      %v85 = vpop.xlane.xlu0 %84
      %86 = vst.msk [vmem:[%s3] sm:$0xff] %vm81, %v85
      %v87 = vld [vmem:[#allocation4] sm:$0xff]
      %88 = vadd.xlane.f32.xlu0 %v87
      %v89 = vpop.xlane.xlu0 %88
      %90 = vst.msk [vmem:[%s4] sm:$0xff] %vm81, %v89
    $region25: #{tpu_custom_call.1} parent=1 // pred_fallthru
      _
    // Predicated region
    $region26: #{tpu_custom_call.1} parent=1 // pred_check
      _
    $region27: #{tpu_custom_call.1} parent=1 // pred_check_branch
      %92 = sbr.rel (0) target = $region29
    $region28: #{tpu_custom_call.1} parent=1 // pred_region
      _
    $region29: #{tpu_custom_call.1} parent=1 // pred_fallthru
      _
    // Predicated region
    $region30: #{tpu_custom_call.1} parent=1 // pred_check
      _
    $region31: #{tpu_custom_call.1} parent=1 // pred_check_branch
      %94 = sbr.rel (0) target = $region33
    $region32: #{tpu_custom_call.1} parent=1 // pred_region
      _
    $region33: #{tpu_custom_call.1} parent=1 // pred_fallthru
      _
    // Predicated region
    $region34: #{tpu_custom_call.1} parent=1 // pred_check
      _
    $region35: #{tpu_custom_call.1} parent=1 // pred_check_branch
      %96 = sbr.rel (0) target = $region37
    $region36: #{tpu_custom_call.1} parent=1 // pred_region
      _
    $region37: #{tpu_custom_call.1} parent=1 // pred_fallthru
      _
    // Predicated region
    $region38: #{tpu_custom_call.1} parent=1 // pred_check
      _
    $region39: #{tpu_custom_call.1} parent=1 // pred_check_branch
      %98 = sbr.rel (0) target = $region41
    $region40: #{tpu_custom_call.1} parent=1 // pred_region
      _
    $region41: #{tpu_custom_call.1} parent=1 // pred_fallthru
      _
    // Predicated region
    $region42: #{tpu_custom_call.1} parent=1 // pred_check
      _
    $region43: #{tpu_custom_call.1} parent=1 // pred_check_branch
      %100 = sbr.rel (0) target = $region45
    $region44: #{tpu_custom_call.1} parent=1 // pred_region
      _
    $region45: #{tpu_custom_call.1} parent=1 // pred_fallthru
      _
    // Predicated region
    $region46: #{tpu_custom_call.1} parent=1 // pred_check
      _
    $region47: #{tpu_custom_call.1} parent=1 // pred_check_branch
      %102 = sbr.rel (0) target = $region49
    $region48: #{tpu_custom_call.1} parent=1 // pred_region
      _
    $region49: #{tpu_custom_call.1} parent=1 // pred_fallthru
      _
    %103 = vsyncpa [#allocation6], 1
    %104 = vsyncpa [#allocation8], 1

</llo_original>
